<compile_context>
chip_gen: v5e
topology: v5e:2x2
jax: 0.10.0
libtpu: 0.0.40
codegen_flags: <defaults>
</compile_context>

<pallas_src>
import jax
import jax.numpy as jnp
from jax.experimental import pallas as pl
from jax.experimental.pallas import tpu as pltpu

EPS = 1e-5
LANE = 128
NUM_CORE_SPLITS = 2                     # leading "parallel" grid axis (v7x: 2 TCs)
_VMEM_LIMIT = 48 * 1024 * 1024          # headroom below v7x physical VMEM (64 MiB)


def _round_up(x, m):
    return ((x + m - 1) // m) * m


def _cdiv(a, b):
    return (a + b - 1) // b


def _row_mask(tile_idx, block_n, n_valid):
    rows = tile_idx * block_n + jax.lax.broadcasted_iota(
        jnp.int32, (block_n, 1), 0)
    return rows < n_valid


def _bf16_dot(h, w):
    # MXU matmul: bf16 inputs, f32 accumulation.
    return jnp.dot(h.astype(jnp.bfloat16), w, preferred_element_type=jnp.float32)


def _accum_stats(sum_ref, ssq_ref, y, mask):
    ym = jnp.where(mask, y, 0.0)
    sum_ref[...] += jnp.sum(ym, axis=0, keepdims=True)
    ssq_ref[...] += jnp.sum(ym * ym, axis=0, keepdims=True)


# -------------------- stage kernels --------------------

def _make_stage1_kernel(n_valid, block_n, tiles_per_core):
    def kernel(x_ref, w1_ref, b1_ref, sum_ref, ssq_ref):
        c, i = pl.program_id(0), pl.program_id(1)

        @pl.when(i == 0)
        def _init():
            sum_ref[...] = jnp.zeros_like(sum_ref)
            ssq_ref[...] = jnp.zeros_like(ssq_ref)

        y1 = jnp.maximum(_bf16_dot(x_ref[...], w1_ref[...]) + b1_ref[...], 0.0)
        _accum_stats(sum_ref, ssq_ref, y1,
                     _row_mask(c * tiles_per_core + i, block_n, n_valid))
    return kernel


def _make_stage2_kernel(n_valid, block_n, tiles_per_core):
    def kernel(x_ref, w1_ref, b1_ref, sc1_ref, sh1_ref, w2_ref, b2_ref,
               y2_ref, sum_ref, ssq_ref):
        c, i = pl.program_id(0), pl.program_id(1)

        @pl.when(i == 0)
        def _init():
            sum_ref[...] = jnp.zeros_like(sum_ref)
            ssq_ref[...] = jnp.zeros_like(ssq_ref)

        # Recompute y1 from x: cheaper than a y1 (n x 256 f32) HBM round-trip.
        y1 = jnp.maximum(_bf16_dot(x_ref[...], w1_ref[...]) + b1_ref[...], 0.0)
        h1 = y1 * sc1_ref[...] + sh1_ref[...]                   # fused BN1
        y2 = jnp.maximum(_bf16_dot(h1, w2_ref[...]) + b2_ref[...], 0.0)
        y2_ref[...] = y2.astype(jnp.bfloat16)                   # bf16 store
        _accum_stats(sum_ref, ssq_ref, y2,
                     _row_mask(c * tiles_per_core + i, block_n, n_valid))
    return kernel


def _make_stage3_kernel(n_valid, block_n, tiles_per_core):
    def kernel(y2_ref, sc2_ref, sh2_ref, w3_ref, b3_ref,
               feat_ref, y3_ref, sum_ref, ssq_ref):
        c, i = pl.program_id(0), pl.program_id(1)

        @pl.when(i == 0)
        def _init():
            sum_ref[...] = jnp.zeros_like(sum_ref)
            ssq_ref[...] = jnp.zeros_like(ssq_ref)

        feat = y2_ref[...].astype(jnp.float32) * sc2_ref[...] + sh2_ref[...]
        feat_ref[...] = feat                                     # module output (f32)
        y3 = jnp.maximum(_bf16_dot(feat, w3_ref[...]) + b3_ref[...], 0.0)
        y3_ref[...] = y3.astype(jnp.bfloat16)                    # bf16 store
        _accum_stats(sum_ref, ssq_ref, y3,
                     _row_mask(c * tiles_per_core + i, block_n, n_valid))
    return kernel


def _make_stage4_kernel():
    def kernel(y3_ref, sc3_ref, sh3_ref, w4_ref, b4_ref, proj_ref):
        h = y3_ref[...].astype(jnp.float32) * sc3_ref[...] + sh3_ref[...]
        proj_ref[...] = _bf16_dot(h, w4_ref[...]) + b4_ref[...]
    return kernel


# -------------------- wrapper --------------------

def _bn_scale_shift(s_parts, ss_parts, gamma, beta, n_valid):
    """Combine per-core-slot partial stats into a fused BN scale/shift."""
    s = jnp.sum(s_parts, axis=0)           # (1, d)
    ss = jnp.sum(ss_parts, axis=0)         # (1, d)
    mean = s / n_valid
    var = jnp.maximum(ss / n_valid - mean * mean, 0.0)
    scale = gamma * jax.lax.rsqrt(var + EPS)
    shift = beta - mean * scale
    return scale, shift


def m3w_forward(x, params, block_rows=1024):
    """Fused Pallas forward pass.  Returns (features, projections)."""
    n, input_dim = x.shape
    d1 = params["w1"].shape[1]             # 256
    latent = params["w2"].shape[1]         # 64
    proj_dim = params["w4"].shape[1]       # 128
    lat_p = _round_up(latent, LANE)        # lane-dense latent width (128)
    pad_l = lat_p - latent

    f32, bf16 = jnp.float32, jnp.bfloat16

    # Weights in bf16 for the MXU; bias / BN params in f32.
    # Latent dim zero-padded to 128 lanes (padded columns stay exactly 0).
    w1 = params["w1"].astype(bf16)
    b1 = params["b1"].astype(f32)
    g1, be1 = params["g1"].astype(f32), params["be1"].astype(f32)
    w2 = jnp.pad(params["w2"], ((0, 0), (0, pad_l))).astype(bf16)
    b2 = jnp.pad(params["b2"], ((0, 0), (0, pad_l))).astype(f32)
    g2 = jnp.pad(params["g2"], ((0, 0), (0, pad_l)),
                 constant_values=1.0).astype(f32)
    be2 = jnp.pad(params["be2"], ((0, 0), (0, pad_l))).astype(f32)
    w3 = jnp.pad(params["w3"], ((0, pad_l), (0, 0))).astype(bf16)
    b3 = params["b3"].astype(f32)
    g3, be3 = params["g3"].astype(f32), params["be3"].astype(f32)
    w4 = params["w4"].astype(bf16)
    b4 = params["b4"].astype(f32)

    # Row tiling: multiple of 16 (bf16 sublane packing); big tiles by default.
    nc = NUM_CORE_SPLITS
    block_n = _round_up(max(16, min(block_rows, _round_up(n, 16))), 16)
    tiles_total = _round_up(_cdiv(n, block_n), nc)
    tiles_per_core = tiles_total // nc
    n_pad = tiles_total * block_n
    grid = (nc, tiles_per_core)

    x_p = jnp.pad(x, ((0, n_pad - n), (0, 0))).astype(bf16)

    def tile_spec(d):
        return pl.BlockSpec((block_n, d), lambda c, i: (c * tiles_per_core + i, 0))

    def const_spec(shape):
        return pl.BlockSpec(shape, lambda c, i: (0,) * len(shape))

    def stat_spec(d):
        # One resident (1, d) slot per core-split; combined in the wrapper.
        return pl.BlockSpec((None, 1, d), lambda c, i: (c, 0, 0))

    def act(d, dt):
        return jax.ShapeDtypeStruct((n_pad, d), dt)

    def stat(d):
        return jax.ShapeDtypeStruct((nc, 1, d), f32)

    cp_acc = pltpu.CompilerParams(dimension_semantics=("parallel", "arbitrary"),
                                  vmem_limit_bytes=_VMEM_LIMIT)
    cp_par = pltpu.CompilerParams(dimension_semantics=("parallel", "parallel"),
                                  vmem_limit_bytes=_VMEM_LIMIT)

    def cost(flops, nbytes):
        return pl.CostEstimate(flops=int(flops), transcendentals=0,
                               bytes_accessed=int(nbytes))

    # --- stage 1: stats of relu(x @ W1 + b1); no activation store ---
    s1, ss1 = pl.pallas_call(
        _make_stage1_kernel(n, block_n, tiles_per_core),
        grid=grid,
        in_specs=[tile_spec(input_dim), const_spec(w1.shape), const_spec(b1.shape)],
        out_specs=(stat_spec(d1), stat_spec(d1)),
        out_shape=(stat(d1), stat(d1)),
        compiler_params=cp_acc,
        cost_estimate=cost(2 * n_pad * input_dim * d1,
                           n_pad * input_dim * 2 + input_dim * d1 * 2
                           + 2 * nc * d1 * 4),
    )(x_p, w1, b1)
    sc1, sh1 = _bn_scale_shift(s1, ss1, g1, be1, float(n))

    # --- stage 2: recompute y1, BN1, Linear(256, lat_p) + ReLU (bf16 store) ---
    y2, s2, ss2 = pl.pallas_call(
        _make_stage2_kernel(n, block_n, tiles_per_core),
        grid=grid,
        in_specs=[tile_spec(input_dim), const_spec(w1.shape), const_spec(b1.shape),
                  const_spec(sc1.shape), const_spec(sh1.shape),
                  const_spec(w2.shape), const_spec(b2.shape)],
        out_specs=(tile_spec(lat_p), stat_spec(lat_p), stat_spec(lat_p)),
        out_shape=(act(lat_p, bf16), stat(lat_p), stat(lat_p)),
        compiler_params=cp_acc,
        cost_estimate=cost(2 * n_pad * (input_dim * d1 + d1 * lat_p),
                           n_pad * input_dim * 2 + n_pad * lat_p * 2
                           + (input_dim * d1 + d1 * lat_p) * 2
                           + 2 * nc * lat_p * 4),
    )(x_p, w1, b1, sc1, sh1, w2, b2)
    sc2, sh2 = _bn_scale_shift(s2, ss2, g2, be2, float(n))

    # --- stage 3: feat = BN2(y2); Linear(lat_p, proj) + ReLU (bf16 store) ---
    feat_p, y3, s3, ss3 = pl.pallas_call(
        _make_stage3_kernel(n, block_n, tiles_per_core),
        grid=grid,
        in_specs=[tile_spec(lat_p), const_spec(sc2.shape), const_spec(sh2.shape),
                  const_spec(w3.shape), const_spec(b3.shape)],
        out_specs=(tile_spec(lat_p), tile_spec(proj_dim),
                   stat_spec(proj_dim), stat_spec(proj_dim)),
        out_shape=(act(lat_p, f32), act(proj_dim, bf16),
                   stat(proj_dim), stat(proj_dim)),
        compiler_params=cp_acc,
        cost_estimate=cost(2 * n_pad * lat_p * proj_dim,
                           n_pad * lat_p * 2 + n_pad * lat_p * 4
                           + n_pad * proj_dim * 2 + lat_p * proj_dim * 2
                           + 2 * nc * proj_dim * 4),
    )(y2, sc2, sh2, w3, b3)
    sc3, sh3 = _bn_scale_shift(s3, ss3, g3, be3, float(n))

    # --- stage 4: BN3 -> Linear(proj, proj); fully parallel ---
    proj_p = pl.pallas_call(
        _make_stage4_kernel(),
        grid=grid,
        in_specs=[tile_spec(proj_dim), const_spec(sc3.shape), const_spec(sh3.shape),
                  const_spec(w4.shape), const_spec(b4.shape)],
        out_specs=tile_spec(proj_dim),
        out_shape=act(proj_dim, f32),
        compiler_params=cp_par,
        cost_estimate=cost(2 * n_pad * proj_dim * proj_dim,
                           n_pad * proj_dim * 2 + n_pad * proj_dim * 4
                           + proj_dim * proj_dim * 2),
    )(y3, sc3, sh3, w4, b4)

    features = feat_p[:n, :latent]
    projections = proj_p[:n, :]
    return features, projections


# -------------------- params / reference --------------------

def init_params(key, input_dim, projection_dim=128, latent_dim=64):
    """Deterministic synthetic parameters (shapes match the PyTorch module)."""
    dims = [
        (input_dim, 256),                   # encoder Linear 1
        (256, latent_dim),                  # encoder Linear 2
        (latent_dim, projection_dim),       # head Linear 1
        (projection_dim, projection_dim),   # head Linear 2
    ]
    params = {}
    for i, (din, dout) in enumerate(dims, start=1):
        key, kw, kb = jax.random.split(key, 3)
        bound = 1.0 / jnp.sqrt(float(din))
        params[f"w{i}"] = jax.random.uniform(kw, (din, dout), jnp.float32,
                                             -bound, bound)
        params[f"b{i}"] = jax.random.uniform(kb, (1, dout), jnp.float32,
                                             -bound, bound)
    # BatchNorm affine params (gamma=1, beta=0), fresh-module training mode.
    for i, d in zip((1, 2, 3), (256, latent_dim, projection_dim)):
        params[f"g{i}"] = jnp.ones((1, d), jnp.float32)
        params[f"be{i}"] = jnp.zeros((1, d), jnp.float32)
    return params


def _reference_forward(x, params):
    """Pure-JAX mirror of the kernel numerics: bf16 matmuls, bf16 stores of
    y2/y3, full-batch BN stats taken in f32 before the bf16 downcast."""
    f32, bf16 = jnp.float32, jnp.bfloat16

    def dot16(h, w):
        return jnp.dot(h.astype(bf16), w.astype(bf16),
                       preferred_element_type=f32)

    def bn_scale_shift(y, g, be):
        mean = jnp.mean(y, axis=0, keepdims=True)
        var = jnp.maximum(jnp.mean(y * y, axis=0, keepdims=True) - mean * mean, 0.0)
        scale = g * jax.lax.rsqrt(var + EPS)
        return scale, be - mean * scale

    y1 = jnp.maximum(dot16(x, params["w1"]) + params["b1"], 0.0)   # never stored
    sc1, sh1 = bn_scale_shift(y1, params["g1"], params["be1"])
    y2 = jnp.maximum(dot16(y1 * sc1 + sh1, params["w2"]) + params["b2"], 0.0)
    sc2, sh2 = bn_scale_shift(y2, params["g2"], params["be2"])
    y2b = y2.astype(bf16).astype(f32)                              # bf16 store
    feat = y2b * sc2 + sh2
    y3 = jnp.maximum(dot16(feat, params["w3"]) + params["b3"], 0.0)
    sc3, sh3 = bn_scale_shift(y3, params["g3"], params["be3"])
    y3b = y3.astype(bf16).astype(f32)                              # bf16 store
    proj = dot16(y3b * sc3 + sh3, params["w4"]) + params["b4"]
    return feat, proj


if __name__ == "__main__":
    input_dim, projection_dim, latent_dim = 32, 128, 64

    key = jax.random.PRNGKey(0)
    key, kx = jax.random.split(key)
    params = init_params(key, input_dim, projection_dim, latent_dim)

    # Case 1: tiny batch, one tile per core-slot (default big tiles clamp to 16).
    x1 = jax.random.normal(kx, (8, input_dim), jnp.float32)
    feat1, proj1 = m3w_forward(x1, params)
    jax.block_until_ready((feat1, proj1))
    f_ref1, p_ref1 = _reference_forward(x1, params)
    assert feat1.shape == (8, latent_dim) and proj1.shape == (8, projection_dim)
    assert jnp.allclose(feat1, f_ref1, atol=1e-2, rtol=1e-2)
    assert jnp.allclose(proj1, p_ref1, atol=1e-2, rtol=1e-2)

    # Case 2: multi-tile grid (2 core-slots x 2 tiles each) with batch padding,
    # per-core-slot stat accumulators and masked full-batch BN stats.
    key, kx2 = jax.random.split(key)
    x2 = jax.random.normal(kx2, (40, input_dim), jnp.float32)
    feat2, proj2 = m3w_forward(x2, params, block_rows=16)
    jax.block_until_ready((feat2, proj2))
    f_ref2, p_ref2 = _reference_forward(x2, params)
    assert jnp.allclose(feat2, f_ref2, atol=1e-2, rtol=1e-2)
    assert jnp.allclose(proj2, p_ref2, atol=1e-2, rtol=1e-2)

    print("KERNEL_OK")
</pallas_src>

<mosaic_0001>
module attributes {stable_mosaic.version = 11 : i64} {
  func.func @kernel(%arg0: i32, %arg1: i32, %arg2: memref<16x32xbf16, #tpu.memory_space<vmem>>, %arg3: memref<32x256xbf16, #tpu.memory_space<vmem>>, %arg4: memref<1x256xf32, #tpu.memory_space<vmem>>, %arg5: memref<1x1x256xf32, #tpu.memory_space<vmem>>, %arg6: memref<1x1x256xf32, #tpu.memory_space<vmem>>) attributes {dimension_semantics = [#tpu.dimension_semantics<parallel>, #tpu.dimension_semantics<arbitrary>], iteration_bounds = array<i64: 2, 1>, scalar_prefetch = 0 : i64, scratch_operands = 0 : i64, tpu.core_type = #tpu.core_type<tc>, window_params = [{transform_indices = @transform_0, window_bounds = array<i64: 16, 32>}, {pipeline_mode = #tpu.pipeline_mode<synchronous>, transform_indices = @transform_1, window_bounds = array<i64: 32, 256>}, {pipeline_mode = #tpu.pipeline_mode<synchronous>, transform_indices = @transform_2, window_bounds = array<i64: 1, 256>}, {transform_indices = @transform_3, window_bounds = array<i64: 1, 1, 256>}, {transform_indices = @transform_4, window_bounds = array<i64: 1, 1, 256>}]} {
    %c0_i32 = arith.constant 0 : i32
    %0 = arith.cmpi eq, %arg1, %c0_i32 : i32
    %1 = arith.extui %0 : i1 to i32
    %c0_i32_0 = arith.constant 0 : i32
    %2 = arith.cmpi ne, %1, %c0_i32_0 : i32
    scf.if %2 {
      %cst_22 = arith.constant 0.000000e+00 : f32
      %40 = vector.broadcast %cst_22 : f32 to vector<1x256xf32>
      %c0_23 = arith.constant 0 : index
      %c0_24 = arith.constant 0 : index
      %c0_25 = arith.constant 0 : index
      %41 = vector.load %arg5[%c0_23, %c0_24, %c0_25] : memref<1x1x256xf32, #tpu.memory_space<vmem>>, vector<1x1x256xf32>
      %42 = vector.shape_cast %41 : vector<1x1x256xf32> to vector<1x256xf32>
      %43 = vector.shape_cast %40 : vector<1x256xf32> to vector<1x1x256xf32>
      tpu.vector_store %arg5[%c0_23, %c0_24, %c0_25], %43 {strides = array<i32>} : memref<1x1x256xf32, #tpu.memory_space<vmem>>, vector<1x1x256xf32>,
      %cst_26 = arith.constant 0.000000e+00 : f32
      %44 = vector.broadcast %cst_26 : f32 to vector<1x256xf32>
      %c0_27 = arith.constant 0 : index
      %c0_28 = arith.constant 0 : index
      %c0_29 = arith.constant 0 : index
      %45 = vector.load %arg6[%c0_27, %c0_28, %c0_29] : memref<1x1x256xf32, #tpu.memory_space<vmem>>, vector<1x1x256xf32>
      %46 = vector.shape_cast %45 : vector<1x1x256xf32> to vector<1x256xf32>
      %47 = vector.shape_cast %44 : vector<1x256xf32> to vector<1x1x256xf32>
      tpu.vector_store %arg6[%c0_27, %c0_28, %c0_29], %47 {strides = array<i32>} : memref<1x1x256xf32, #tpu.memory_space<vmem>>, vector<1x1x256xf32>,
    } else {
    }
    %c0 = arith.constant 0 : index
    %c0_1 = arith.constant 0 : index
    %3 = vector.load %arg2[%c0, %c0_1] : memref<16x32xbf16, #tpu.memory_space<vmem>>, vector<16x32xbf16>
    %c0_2 = arith.constant 0 : index
    %c0_3 = arith.constant 0 : index
    %4 = vector.load %arg3[%c0_2, %c0_3] : memref<32x256xbf16, #tpu.memory_space<vmem>>, vector<32x256xbf16>
    %cst = arith.constant dense<0.000000e+00> : vector<16x256xf32>
    %5 = tpu.matmul %3, %4, %cst {dimension_numbers = #tpu.dot_dimension_numbers<[1], [0], [0], [1], [0, 0, 1, 1], [], []>} : vector<16x32xbf16>, vector<32x256xbf16>, vector<16x256xf32> -> vector<16x256xf32>
    %c0_4 = arith.constant 0 : index
    %c0_5 = arith.constant 0 : index
    %6 = vector.load %arg4[%c0_4, %c0_5] : memref<1x256xf32, #tpu.memory_space<vmem>>, vector<1x256xf32>
    %7 = vector.broadcast %6 : vector<1x256xf32> to vector<16x256xf32>
    %8 = arith.addf %5, %7 : vector<16x256xf32>
    %cst_6 = arith.constant 0.000000e+00 : f32
    %9 = vector.broadcast %cst_6 : f32 to vector<16x256xf32>
    %10 = arith.maximumf %8, %9 : vector<16x256xf32>
    %c1_i32 = arith.constant 1 : i32
    %11 = arith.muli %arg0, %c1_i32 : i32
    %12 = arith.addi %11, %arg1 : i32
    %c16_i32 = arith.constant 16 : i32
    %13 = arith.muli %12, %c16_i32 : i32
    %14 = tpu.iota {dimensions = array<i32: 0>} : vector<16x1xi32>
    %15 = vector.broadcast %13 : i32 to vector<16x1xi32>
    %16 = arith.addi %15, %14 : vector<16x1xi32>
    %c8_i32 = arith.constant 8 : i32
    %17 = vector.broadcast %c8_i32 : i32 to vector<16x1xi32>
    %18 = arith.cmpi slt, %16, %17 : vector<16x1xi32>
    %cst_7 = arith.constant 0.000000e+00 : f32
    %19 = vector.shape_cast %18 : vector<16x1xi1> to vector<16x1xi1>
    %20 = vector.broadcast %19 : vector<16x1xi1> to vector<16x256xi1>
    %21 = vector.broadcast %cst_7 : f32 to vector<16x256xf32>
    %22 = arith.select %20, %10, %21 : vector<16x256xi1>, vector<16x256xf32>
    %c0_8 = arith.constant 0 : index
    %c0_9 = arith.constant 0 : index
    %c0_10 = arith.constant 0 : index
    %23 = vector.load %arg5[%c0_8, %c0_9, %c0_10] : memref<1x1x256xf32, #tpu.memory_space<vmem>>, vector<1x1x256xf32>
    %24 = vector.shape_cast %23 : vector<1x1x256xf32> to vector<1x256xf32>
    %cst_11 = arith.constant dense<0.000000e+00> : vector<256xf32>
    %25 = vector.multi_reduction <add>, %22, %cst_11 [0] : vector<16x256xf32> to vector<256xf32>
    %26 = vector.shape_cast %25 : vector<256xf32> to vector<1x256xf32>
    %27 = arith.addf %24, %26 : vector<1x256xf32>
    %c0_12 = arith.constant 0 : index
    %c0_13 = arith.constant 0 : index
    %c0_14 = arith.constant 0 : index
    %28 = vector.load %arg5[%c0_12, %c0_13, %c0_14] : memref<1x1x256xf32, #tpu.memory_space<vmem>>, vector<1x1x256xf32>
    %29 = vector.shape_cast %28 : vector<1x1x256xf32> to vector<1x256xf32>
    %30 = vector.shape_cast %27 : vector<1x256xf32> to vector<1x1x256xf32>
    tpu.vector_store %arg5[%c0_12, %c0_13, %c0_14], %30 {strides = array<i32>} : memref<1x1x256xf32, #tpu.memory_space<vmem>>, vector<1x1x256xf32>,
    %c0_15 = arith.constant 0 : index
    %c0_16 = arith.constant 0 : index
    %c0_17 = arith.constant 0 : index
    %31 = vector.load %arg6[%c0_15, %c0_16, %c0_17] : memref<1x1x256xf32, #tpu.memory_space<vmem>>, vector<1x1x256xf32>
    %32 = vector.shape_cast %31 : vector<1x1x256xf32> to vector<1x256xf32>
    %33 = arith.mulf %22, %22 : vector<16x256xf32>
    %cst_18 = arith.constant dense<0.000000e+00> : vector<256xf32>
    %34 = vector.multi_reduction <add>, %33, %cst_18 [0] : vector<16x256xf32> to vector<256xf32>
    %35 = vector.shape_cast %34 : vector<256xf32> to vector<1x256xf32>
    %36 = arith.addf %32, %35 : vector<1x256xf32>
    %c0_19 = arith.constant 0 : index
    %c0_20 = arith.constant 0 : index
    %c0_21 = arith.constant 0 : index
    %37 = vector.load %arg6[%c0_19, %c0_20, %c0_21] : memref<1x1x256xf32, #tpu.memory_space<vmem>>, vector<1x1x256xf32>
    %38 = vector.shape_cast %37 : vector<1x1x256xf32> to vector<1x256xf32>
    %39 = vector.shape_cast %36 : vector<1x256xf32> to vector<1x1x256xf32>
    tpu.vector_store %arg6[%c0_19, %c0_20, %c0_21], %39 {strides = array<i32>} : memref<1x1x256xf32, #tpu.memory_space<vmem>>, vector<1x1x256xf32>,
    return
  }
  func.func @transform_0(%arg0: i32, %arg1: i32) -> (i32, i32) {
    %c1_i32 = arith.constant 1 : i32
    %0 = arith.muli %arg0, %c1_i32 : i32
    %1 = arith.addi %0, %arg1 : i32
    %c0_i32 = arith.constant 0 : i32
    %c0_i32_0 = arith.constant 0 : i32
    return %1, %c0_i32 : i32, i32
  }
  func.func @transform_1(%arg0: i32, %arg1: i32) -> (i32, i32) {
    %c0_i32 = arith.constant 0 : i32
    %c0_i32_0 = arith.constant 0 : i32
    %c0_i32_1 = arith.constant 0 : i32
    return %c0_i32, %c0_i32_0 : i32, i32
  }
  func.func @transform_2(%arg0: i32, %arg1: i32) -> (i32, i32) {
    %c0_i32 = arith.constant 0 : i32
    %c0_i32_0 = arith.constant 0 : i32
    %c0_i32_1 = arith.constant 0 : i32
    return %c0_i32, %c0_i32_0 : i32, i32
  }
  func.func @transform_3(%arg0: i32, %arg1: i32) -> (i32, i32, i32) {
    %c0_i32 = arith.constant 0 : i32
    %c0_i32_0 = arith.constant 0 : i32
    %c0_i32_1 = arith.constant 0 : i32
    return %arg0, %c0_i32, %c0_i32_0 : i32, i32, i32
  }
  func.func @transform_4(%arg0: i32, %arg1: i32) -> (i32, i32, i32) {
    %c0_i32 = arith.constant 0 : i32
    %c0_i32_0 = arith.constant 0 : i32
    %c0_i32_1 = arith.constant 0 : i32
    return %arg0, %c0_i32, %c0_i32_0 : i32, i32, i32
  }
}

</mosaic_0001>

<llo_original>
// kernel: tpu_custom_call.1
$region0: #{tpu_custom_call.1}
  #allocation0 [shape = 'u32[]', space=smem, size = 0x4, offset = 0x4, fixed_abs, tag = 'smem constant byte address 0x4 - core index']
  #allocation1 [shape = 'u32[72,128]{1,0:T(1,128)}', space=vmem, size = 0x9000, scoped, tag = 'internal scratch']
  %s0 = inlined_call_operand.hbm [shape: bf16[32,32], index: 0, kind: input, shape index: {}]
  %s1 = inlined_call_operand.hbm [shape: bf16[32,256], index: 1, kind: input, shape index: {}]
  %s2 = inlined_call_operand.hbm [shape: f32[1,256], index: 2, kind: input, shape index: {}]
  %s3 = inlined_call_operand.hbm [shape: f32[2,1,256], index: 3, kind: output, shape index: {0}]
  %s4 = inlined_call_operand.hbm [shape: f32[2,1,256], index: 4, kind: output, shape index: {1}]
  %5 = xla_tuple %s3, %s4
  %s6 = sld [smem:[#allocation0]]
  $region69: #{tpu_custom_call.1} parent=0
    _
  %s8 = ssub.s32 1, %s6
  %s9 = scalar_select 0, %s8, %s6
  $region1: #{tpu_custom_call.1} parent=0
    #allocation2 [shape = 'u8[8192]{0}', space=vmem, size = 0x2000, scoped, tag = 'input window, operand 0']
    #allocation3 [shape = 's32[2]{0}', space=sflag, size = 0x8, scoped, tag = 'scoped memory for tpu_custom_call.1']
    #allocation4 [shape = 's32[2]{0}', space=sflag, size = 0x8, scoped, tag = 'scoped memory for tpu_custom_call.1']
    #allocation5 [shape = 'u8[16384]{0}', space=vmem, size = 0x4000, scoped, tag = 'input window, operand 1, single buffered']
    #allocation6 [shape = 's32[1]{0}', space=sflag, size = 0x4, scoped, tag = 'scoped memory for tpu_custom_call.1']
    #allocation7 [shape = 'u8[1024]{0}', space=vmem, size = 0x400, scoped, tag = 'input window, operand 2, single buffered']
    #allocation8 [shape = 'u8[2048]{0}', space=vmem, size = 0x800, scoped, tag = 'output window, operand 0']
    #allocation9 [shape = 'u8[2048]{0}', space=vmem, size = 0x800, scoped, tag = 'output window, operand 1']
    #allocation10 [shape = 's32[2]{0}', space=sflag, size = 0x8, scoped, tag = 'scoped memory for tpu_custom_call.1']
    %10 = vsyncpa [#allocation3], 0
    %s11 = scalar_lea.sflag [#allocation3], 1
    %12 = vsyncpa %s11, 0
    %13 = vsyncpa [#allocation6], 0
    %14 = vsyncpa [#allocation4], 0
    %s15 = scalar_lea.sflag [#allocation4], 1
    %16 = vsyncpa %s15, 0
    %17 = vsyncpa [#allocation10], 0
    %s18 = scalar_lea.sflag [#allocation10], 1
    %19 = vsyncpa %s18, 0
    loop: start=0, step=1, limit=4
    $region2: #{tpu_custom_call.1} parent=1 // loop_pre_header
      _
    $region3: #{tpu_custom_call.1} parent=1 // loop_header
      %s21 = sphi 0, %s25
      %p22 = scmp.ge.s32.totalorder %s21, 4
      %s28 = sphi 0, %s40
      %s29 = sphi 0, %s36
      %s30 = sphi 0, %s28
      %s31 = sphi 0, %s29
      %s32 = sphi 0, %s30
      %s33 = sphi 0, %s31
      %s45 = sphi 0, %s47
      %s48 = sphi 0, %s45
      %s49 = sphi 0, %s48
      %s65 = sphi 0, %s49
      %s69 = sphi 0, %s69
      %s71 = sphi 0, %s69
      %s72 = sphi 0, %s71
      %s86 = sphi 0, %s72
      %s90 = sphi 0, %s90
      %s92 = sphi 0, %s90
      %s93 = sphi 0, %s92
      %s107 = sphi 0, %s93
      %s113 = sphi 0, %s115
      %s116 = sphi 0, %s113
      %s117 = sphi 0, %s116
      %s133 = sphi 0, %s117
      %s139 = sphi 0, %s141
      %s142 = sphi 0, %s139
      %s143 = sphi 0, %s142
      %s159 = sphi 0, %s143
    $region4: #{tpu_custom_call.1} parent=1 // loop_header_branch
      %24 = sbr.rel (%p22) target = $region8
    $region5: #{tpu_custom_call.1} parent=1 // loop_body
      %s26 = ssub.s32 %s21, 1
      %s27 = ssub.s32 %s21, 2
      %s34 = sadd.s32 1, %s29
      %p35 = scmp.ge.s32.totalorder %s34, 1
      %s36 = scalar_select %p35, 0, %s34
      %s37 = sadd.s32 1, %s28
      %s38 = scalar_select %p35, %s37, %s28
      %p39 = scmp.ge.s32.totalorder %s38, 2
      %s40 = scalar_select %p39, 0, %s38
      %s41 = sadd.s32 %s28, %s29
      %s42 = sadd.s32 %s40, %s36
      %s43 = ssub.s32 %s41, %s42
      %p44 = scmp.eq.s32.totalorder %s43, 0
      %s46 = sadd.s32 %s45, 1
      %s47 = scalar_select %p44, %s45, %s46
      %p50 = pneg %p44
      %p51 = scmp.eq.s32.totalorder %s21, 1
      %p52 = por %p50, %p51
      %p53 = scmp.ne.s32.totalorder %s45, %s48
      %p54 = scmp.eq.s32.totalorder %s21, 0
      %p55 = por %p53, %p54
      %p56 = scmp.ne.s32.totalorder %s45, %s48
      %p57 = scmp.eq.s32.totalorder %s26, 1
      %p58 = por %p56, %p57
      %p59 = scmp.ne.s32.totalorder %s48, %s49
      %p60 = scmp.eq.s32.totalorder %s26, 0
      %p61 = por %p59, %p60
      %p62 = scmp.ne.s32.totalorder %s48, %s49
      %p63 = scmp.eq.s32.totalorder %s27, 1
      %p64 = por %p62, %p63
      %p66 = scmp.ne.s32.totalorder %s49, %s65
      %p67 = scmp.eq.s32.totalorder %s27, 0
      %p68 = por %p66, %p67
      %s70 = sadd.s32 %s69, 1
      %p73 = scmp.eq.s32.totalorder %s21, 1
      %p74 = scmp.ne.s32.totalorder %s69, %s71
      %p75 = scmp.eq.s32.totalorder %s21, 0
      %p76 = por %p74, %p75
      %p77 = scmp.ne.s32.totalorder %s69, %s71
      %p78 = scmp.eq.s32.totalorder %s26, 1
      %p79 = por %p77, %p78
      %p80 = scmp.ne.s32.totalorder %s71, %s72
      %p81 = scmp.eq.s32.totalorder %s26, 0
      %p82 = por %p80, %p81
      %p83 = scmp.ne.s32.totalorder %s71, %s72
      %p84 = scmp.eq.s32.totalorder %s27, 1
      %p85 = por %p83, %p84
      %p87 = scmp.ne.s32.totalorder %s72, %s86
      %p88 = scmp.eq.s32.totalorder %s27, 0
      %p89 = por %p87, %p88
      %s91 = sadd.s32 %s90, 1
      %p94 = scmp.eq.s32.totalorder %s21, 1
      %p95 = scmp.ne.s32.totalorder %s90, %s92
      %p96 = scmp.eq.s32.totalorder %s21, 0
      %p97 = por %p95, %p96
      %p98 = scmp.ne.s32.totalorder %s90, %s92
      %p99 = scmp.eq.s32.totalorder %s26, 1
      %p100 = por %p98, %p99
      %p101 = scmp.ne.s32.totalorder %s92, %s93
      %p102 = scmp.eq.s32.totalorder %s26, 0
      %p103 = por %p101, %p102
      %p104 = scmp.ne.s32.totalorder %s92, %s93
      %p105 = scmp.eq.s32.totalorder %s27, 1
      %p106 = por %p104, %p105
      %p108 = scmp.ne.s32.totalorder %s93, %s107
      %p109 = scmp.eq.s32.totalorder %s27, 0
      %p110 = por %p108, %p109
      %s111 = ssub.s32 %s28, %s40
      %p112 = scmp.eq.s32.totalorder %s111, 0
      %s114 = sadd.s32 %s113, 1
      %s115 = scalar_select %p112, %s113, %s114
      %p118 = pneg %p112
      %p119 = scmp.eq.s32.totalorder %s21, 1
      %p120 = por %p118, %p119
      %p121 = scmp.ne.s32.totalorder %s113, %s116
      %p122 = scmp.eq.s32.totalorder %s21, 0
      %p123 = por %p121, %p122
      %p124 = scmp.ne.s32.totalorder %s113, %s116
      %p125 = scmp.eq.s32.totalorder %s26, 1
      %p126 = por %p124, %p125
      %p127 = scmp.ne.s32.totalorder %s116, %s117
      %p128 = scmp.eq.s32.totalorder %s26, 0
      %p129 = por %p127, %p128
      %p130 = scmp.ne.s32.totalorder %s116, %s117
      %p131 = scmp.eq.s32.totalorder %s27, 1
      %p132 = por %p130, %p131
      %p134 = scmp.ne.s32.totalorder %s117, %s133
      %p135 = scmp.eq.s32.totalorder %s27, 0
      %p136 = por %p134, %p135
      %s137 = ssub.s32 %s28, %s40
      %p138 = scmp.eq.s32.totalorder %s137, 0
      %s140 = sadd.s32 %s139, 1
      %s141 = scalar_select %p138, %s139, %s140
      %p144 = pneg %p138
      %p145 = scmp.eq.s32.totalorder %s21, 1
      %p146 = por %p144, %p145
      %p147 = scmp.ne.s32.totalorder %s139, %s142
      %p148 = scmp.eq.s32.totalorder %s21, 0
      %p149 = por %p147, %p148
      %p150 = scmp.ne.s32.totalorder %s139, %s142
      %p151 = scmp.eq.s32.totalorder %s26, 1
      %p152 = por %p150, %p151
      %p153 = scmp.ne.s32.totalorder %s142, %s143
      %p154 = scmp.eq.s32.totalorder %s26, 0
      %p155 = por %p153, %p154
      %p156 = scmp.ne.s32.totalorder %s142, %s143
      %p157 = scmp.eq.s32.totalorder %s27, 1
      %p158 = por %p156, %p157
      %p160 = scmp.ne.s32.totalorder %s143, %s159
      %p161 = scmp.eq.s32.totalorder %s27, 0
      %p162 = por %p160, %p161
      %p163 = scmp.le.s32.totalorder 1, %s21
      %p164 = scmp.lt.s32.totalorder %s21, 3
      %p165 = pnand %p163, %p164
      %p166 = pneg %p165
      // Predicated region
      $region9: #{tpu_custom_call.1} parent=5 // pred_check
        _
      $region10: #{tpu_custom_call.1} parent=5 // pred_check_branch
        %168 = sbr.rel (%p165) target = $region12
      $region11: #{tpu_custom_call.1} parent=5 // pred_region
        %s169 = ssub.s32 %s21, 1
        // Predicated region
        $region13: #{tpu_custom_call.1} parent=11 // pred_check
          %p170 = pneg %p82
        $region14: #{tpu_custom_call.1} parent=11 // pred_check_branch
          %172 = sbr.rel (%p170) target = $region16
        $region15: #{tpu_custom_call.1} parent=11 // pred_region
          %174 = vsyncadd [#allocation6], 0
          %s175 = sshll.u32 %s1, 4
          %s176 = int_to_ptr.hbm [resolvable:$true] %s175
          %s177 = sshll.u32 [#allocation5], 4
          %s178 = int_to_ptr.vmem [resolvable:$true] %s177
          %183 = dma.hbm_to_vmem [thread:$0]  %s176, 512, %s178, [#allocation6], 128, 128, 8
        $region16: #{tpu_custom_call.1} parent=11 // pred_fallthru
          _
        // Predicated region
        $region17: #{tpu_custom_call.1} parent=11 // pred_check
          %p184 = pneg %p103
        $region18: #{tpu_custom_call.1} parent=11 // pred_check_branch
          %186 = sbr.rel (%p184) target = $region20
        $region19: #{tpu_custom_call.1} parent=11 // pred_region
          %188 = vsyncadd [#allocation6], 0
          %s190 = sshll.u32 %s2, 4
          %s191 = int_to_ptr.hbm [resolvable:$true] %s190
          %s192 = sshll.u32 [#allocation7], 4
          %s193 = int_to_ptr.vmem [resolvable:$true] %s192
          %195 = dma.hbm_to_vmem [thread:$0]  %s191, 32, %s193, [#allocation6]
        $region20: #{tpu_custom_call.1} parent=11 // pred_fallthru
          _
      $region12: #{tpu_custom_call.1} parent=5 // pred_fallthru
        _
      %p196 = scmp.lt.s32.totalorder %s21, 2
      // Predicated region
      $region21: #{tpu_custom_call.1} parent=5 // pred_check
        %p197 = pneg %p196
      $region22: #{tpu_custom_call.1} parent=5 // pred_check_branch
        %199 = sbr.rel (%p197) target = $region24
      $region23: #{tpu_custom_call.1} parent=5 // pred_region
        // Predicated region
        $region25: #{tpu_custom_call.1} parent=23 // pred_check
          %p200 = pneg %p55
        $region26: #{tpu_custom_call.1} parent=23 // pred_check_branch
          %202 = sbr.rel (%p200) target = $region28
        $region27: #{tpu_custom_call.1} parent=23 // pred_region
          %s203 = sand.u32 %s45, 1
          %s204 = scalar_lea.sflag [#allocation3], %s203
          %s205 = sand.u32 %s45, 1
          %s206 = smul.addr %s205, 8
          %s207 = scalar_lea.vmem [#allocation2], %s206
          %s208 = sadd.s32 %s28, %s29
          %s209 = smul.u32 2, %s208
          %211 = vsyncadd %s204, 0
          %s212 = smul.addr %s209, 4
          %s213 = scalar_lea.hbm %s0, %s212
          %s214 = sshll.u32 %s213, 4
          %s215 = int_to_ptr.hbm [resolvable:$true] %s214
          %s216 = sshll.u32 %s207, 4
          %s217 = int_to_ptr.vmem [resolvable:$true] %s216
          %222 = dma.hbm_to_vmem [thread:$0]  %s215, 128, %s217, %s204, 64, 64, 4
        $region28: #{tpu_custom_call.1} parent=23 // pred_fallthru
          _
      $region24: #{tpu_custom_call.1} parent=5 // pred_fallthru
        _
      %p223 = scmp.le.s32.totalorder 1, %s21
      %p224 = scmp.lt.s32.totalorder %s21, 3
      %p225 = pnand %p223, %p224
      %p226 = pneg %p225
      // Predicated region
      $region29: #{tpu_custom_call.1} parent=5 // pred_check
        _
      $region30: #{tpu_custom_call.1} parent=5 // pred_check_branch
        %228 = sbr.rel (%p225) target = $region32
      $region31: #{tpu_custom_call.1} parent=5 // pred_region
        %s229 = ssub.s32 %s21, 1
        %s230 = sand.u32 %s48, 1
        %s231 = scalar_lea.sflag [#allocation3], %s230
        %s232 = sand.u32 %s48, 1
        %s233 = smul.addr %s232, 8
        %s234 = scalar_lea.vmem [#allocation2], %s233
        // Predicated region
        $region33: #{tpu_custom_call.1} parent=31 // pred_check
          %p235 = pneg %p61
        $region34: #{tpu_custom_call.1} parent=31 // pred_check_branch
          %237 = sbr.rel (%p235) target = $region36
        $region35: #{tpu_custom_call.1} parent=31 // pred_region
          %239 = dma.done %s231, 128
        $region36: #{tpu_custom_call.1} parent=31 // pred_fallthru
          _
        // Predicated region
        $region37: #{tpu_custom_call.1} parent=31 // pred_check
          %p240 = pneg %p82
        $region38: #{tpu_custom_call.1} parent=31 // pred_check_branch
          %242 = sbr.rel (%p240) target = $region40
        $region39: #{tpu_custom_call.1} parent=31 // pred_region
          %244 = dma.done [#allocation6], 512
        $region40: #{tpu_custom_call.1} parent=31 // pred_fallthru
          _
        // Predicated region
        $region41: #{tpu_custom_call.1} parent=31 // pred_check
          %p245 = pneg %p103
        $region42: #{tpu_custom_call.1} parent=31 // pred_check_branch
          %247 = sbr.rel (%p245) target = $region44
        $region43: #{tpu_custom_call.1} parent=31 // pred_region
          %249 = dma.done [#allocation6], 32
        $region44: #{tpu_custom_call.1} parent=31 // pred_fallthru
          _
        %s250 = sand.u32 %s48, 1
        %s251 = scalar_lea.sflag [#allocation3], %s250
        %s252 = sand.u32 %s48, 1
        %s253 = smul.addr %s252, 8
        %s254 = scalar_lea.vmem [#allocation2], %s253
        %p255 = pneg %p61
        %p256 = pneg %p58
        %p257 = pneg %p82
        %p258 = pneg %p79
        %p259 = pneg %p103
        %p260 = pneg %p100
        %p261 = pneg %p129
        %p262 = pneg %p126
        %s263 = sand.u32 %s116, 1
        %s264 = scalar_lea.sflag [#allocation4], %s263
        %s265 = sand.u32 %s116, 1
        %s266 = smul.addr %s265, 2
        %s267 = scalar_lea.vmem [#allocation8], %s266
        %p268 = pneg %p155
        %p269 = pneg %p152
        %s270 = sand.u32 %s142, 1
        %s271 = scalar_lea.sflag [#allocation10], %s270
        %s272 = sand.u32 %s142, 1
        %s273 = smul.addr %s272, 2
        %s274 = scalar_lea.vmem [#allocation9], %s273
        %s275 = sadd.s32 %s30, %s31
        %s276 = smul.u32 2, %s275
        %p278 = scmp.eq.s32.totalorder %s31, 0
        // Predicated region
        $region45: #{tpu_custom_call.1} parent=31 // pred_check
          %p279 = pneg %p278
        $region46: #{tpu_custom_call.1} parent=31 // pred_check_branch
          %281 = sbr.rel (%p279) target = $region48
        $region47: #{tpu_custom_call.1} parent=31 // pred_region
          %v282 = vlaneseq
          %vm283 = vcmp.ge.s32.totalorder %v282, 0
          %vm284 = vcmp.lt.s32.totalorder %v282, 256
          %vm285 = vmand %vm283, %vm284
          %286 = vst.msk [vmem:[%s267] sm:$0x3] %vm285, 0.0
          %287 = vst.msk [vmem:[%s274] sm:$0x3] %vm285, 0.0
        $region48: #{tpu_custom_call.1} parent=31 // pred_fallthru
          _
        %v288 = vld [vmem:[%s234] sm:$0xf]
        %v289 = vld [vmem:[%s234 + $0x4] sm:$0xf]
        %v290 = vld [vmem:[#allocation5] sm:$0xff]
        %v291 = vld [vmem:[#allocation5 + $0x8] sm:$0xff]
        %v292 = vld [vmem:[#allocation5 + $0x10] sm:$0xff]
        %v293 = vld [vmem:[#allocation5 + $0x18] sm:$0xff]
        %v294 = vld [vmem:[#allocation7] sm:$0x3]
        %v296 = vperm.slane %v294, 0
        %v297 = vperm.slane %v294, 1
        %v302 = vunpack.c.l.b16 %v288
        %v303 = vunpack.c.l.b16 %v289
        %v304 = vpack.c.b16 %v303, %v302
        %v309 = vunpack.c.l.b16 %v290
        %v310 = vunpack.c.h.b16 %v290
        %v311 = vunpack.c.l.b16 %v291
        %v312 = vunpack.c.h.b16 %v291
        %v313 = vunpack.c.l.b16 %v292
        %v314 = vunpack.c.h.b16 %v292
        %v315 = vunpack.c.l.b16 %v293
        %v316 = vunpack.c.h.b16 %v293
        %v317 = vpack.c.b16 %v311, %v309
        %v318 = vpack.c.b16 %v312, %v310
        %v319 = vpack.c.b16 %v315, %v313
        %v320 = vpack.c.b16 %v316, %v314
        %vm325 = vcmask 261120
        %v327 = vsel %vm325, %v304, 0
        %329 = vmatpush.bf16.msra.mxu0 0
        %330 = vmatpush.bf16.msra.mxu0 0
        %331 = vmatpush.bf16.msra.mxu0 0
        %332 = vmatpush.bf16.msra.mxu0 0
        %333 = vmatpush.bf16.msra.mxu0 0
        %334 = vmatpush.bf16.msra.mxu0 0
        %335 = vmatpush.bf16.msra.mxu0 %v319
        %336 = vmatpush.bf16.msra.mxu0 %v317
        %337 = vmatmul.bf16.gmra.mxu0 %v327
        %v338 = vpop.f32.mrf.mxu0
        %v339 = vadd.f32 %v296, %v338
        %v340 = vpop.f32.mrf.mxu0
        %v341 = vadd.f32 %v296, %v340
        %342 = vdwg.mxu0
        %343 = vmatpush.bf16.msra.mxu0 0
        %344 = vmatpush.bf16.msra.mxu0 0
        %345 = vmatpush.bf16.msra.mxu0 0
        %346 = vmatpush.bf16.msra.mxu0 0
        %347 = vmatpush.bf16.msra.mxu0 0
        %348 = vmatpush.bf16.msra.mxu0 0
        %349 = vmatpush.bf16.msra.mxu0 %v320
        %350 = vmatpush.bf16.msra.mxu0 %v318
        %351 = vmatmul.bf16.gmra.mxu0 %v327
        %v352 = vpop.f32.mrf.mxu0
        %v353 = vadd.f32 %v297, %v352
        %v354 = vpop.f32.mrf.mxu0
        %v355 = vadd.f32 %v297, %v354
        %356 = vdwg.mxu0
        %v357 = vmax.f32 %v339, 0.0
        %v358 = vmax.f32 %v353, 0.0
        %v359 = vmax.f32 %v341, 0.0
        %v360 = vmax.f32 %v355, 0.0
        %s361 = sadd.s32 %s30, %s31
        %s362 = smul.u32 %s361, 16
        %v363 = vlaneseq
        %v364 = vshrl.u32 %v363, 7
        %v365 = vadd.s32 %v364, 8
        %v366 = vstv %s362
        %v367 = vadd.s32 %v366, %v364
        %v368 = vadd.s32 %v366, %v365
        %vm369 = vcmp.lt.s32.totalorder %v367, 8
        %vm370 = vcmp.lt.s32.totalorder %v368, 8
        %v371 = vsel %vm369, 1, 0
        %v372 = vsel %vm370, 1, 0
        %vm373 = vcmp.eq.s32.totalorder %v371, 1
        %vm374 = vcmp.eq.s32.totalorder %v372, 1
        %v375 = vsel %vm373, %v357, 0.0
        %v376 = vsel %vm373, %v358, 0.0
        %v377 = vsel %vm374, %v359, 0.0
        %v378 = vsel %vm374, %v360, 0.0
        %v379 = vld [vmem:[%s267] sm:$0x3]
        %v380 = vadd.f32 %v375, %v377
        %v381 = vrot.slane %v380, 4
        %v382 = vadd.f32 %v380, %v381
        %v383 = vrot.slane %v382, 2
        %v384 = vadd.f32 %v382, %v383
        %v385 = vrot.slane %v384, 1
        %v386 = vadd.f32 %v384, %v385
        %v387 = vadd.f32 %v376, %v378
        %v388 = vrot.slane %v387, 4
        %v389 = vadd.f32 %v387, %v388
        %v390 = vrot.slane %v389, 2
        %v391 = vadd.f32 %v389, %v390
        %v392 = vrot.slane %v391, 1
        %v393 = vadd.f32 %v391, %v392
        %v396 = vrot.slane %v393, 7
        %vm397 = vcmask 1040384
        %v398 = vsel %vm397, %v386, %v396
        %v400 = vadd.f32 %v379, %v398
        %v401 = vlaneseq
        %vm402 = vcmp.ge.s32.totalorder %v401, 0
        %vm403 = vcmp.lt.s32.totalorder %v401, 256
        %vm404 = vmand %vm402, %vm403
        %405 = vst.msk [vmem:[%s267] sm:$0x3] %vm404, %v400
        %v406 = vld [vmem:[%s274] sm:$0x3]
        %v407 = vmul.f32 %v375, %v375
        %v408 = vmul.f32 %v376, %v376
        %v409 = vmul.f32 %v377, %v377
        %v410 = vmul.f32 %v378, %v378
        %v411 = vadd.f32 %v407, %v409
        %v412 = vrot.slane %v411, 4
        %v413 = vadd.f32 %v411, %v412
        %v414 = vrot.slane %v413, 2
        %v415 = vadd.f32 %v413, %v414
        %v416 = vrot.slane %v415, 1
        %v417 = vadd.f32 %v415, %v416
        %v418 = vadd.f32 %v408, %v410
        %v419 = vrot.slane %v418, 4
        %v420 = vadd.f32 %v418, %v419
        %v421 = vrot.slane %v420, 2
        %v422 = vadd.f32 %v420, %v421
        %v423 = vrot.slane %v422, 1
        %v424 = vadd.f32 %v422, %v423
        %v427 = vrot.slane %v424, 7
        %v428 = vsel %vm397, %v417, %v427
        %v430 = vadd.f32 %v406, %v428
        %431 = vst.msk [vmem:[%s274] sm:$0x3] %vm404, %v430
        %s432 = sand.u32 %s116, 1
        %s433 = scalar_lea.sflag [#allocation4], %s432
        %s434 = sand.u32 %s116, 1
        %s435 = smul.addr %s434, 2
        %s436 = scalar_lea.vmem [#allocation8], %s435
        %s437 = sand.u32 %s142, 1
        %s438 = scalar_lea.sflag [#allocation10], %s437
        %s439 = sand.u32 %s142, 1
        %s440 = smul.addr %s439, 2
        %s441 = scalar_lea.vmem [#allocation9], %s440
        // Predicated region
        $region49: #{tpu_custom_call.1} parent=31 // pred_check
          %p442 = pneg %p126
        $region50: #{tpu_custom_call.1} parent=31 // pred_check_branch
          %444 = sbr.rel (%p442) target = $region52
        $region51: #{tpu_custom_call.1} parent=31 // pred_region
          %446 = vsyncadd %s433, 0
          %s447 = smul.addr %s30, 2
          %s448 = scalar_lea.hbm %s3, %s447
          %s450 = sshll.u32 %s436, 4
          %s451 = int_to_ptr.vmem [resolvable:$true] %s450
          %s452 = sshll.u32 %s448, 4
          %s453 = int_to_ptr.hbm [resolvable:$true] %s452
          %455 = dma.vmem_to_hbm [thread:$0]  %s451, 32, %s453, %s433
        $region52: #{tpu_custom_call.1} parent=31 // pred_fallthru
          _
        // Predicated region
        $region53: #{tpu_custom_call.1} parent=31 // pred_check
          %p456 = pneg %p152
        $region54: #{tpu_custom_call.1} parent=31 // pred_check_branch
          %458 = sbr.rel (%p456) target = $region56
        $region55: #{tpu_custom_call.1} parent=31 // pred_region
          %460 = vsyncadd %s438, 0
          %s461 = smul.addr %s30, 2
          %s462 = scalar_lea.hbm %s4, %s461
          %s464 = sshll.u32 %s441, 4
          %s465 = int_to_ptr.vmem [resolvable:$true] %s464
          %s466 = sshll.u32 %s462, 4
          %s467 = int_to_ptr.hbm [resolvable:$true] %s466
          %469 = dma.vmem_to_hbm [thread:$0]  %s465, 32, %s467, %s438
        $region56: #{tpu_custom_call.1} parent=31 // pred_fallthru
          _
      $region32: #{tpu_custom_call.1} parent=5 // pred_fallthru
        _
      %p470 = scmp.le.s32.totalorder 2, %s21
      // Predicated region
      $region57: #{tpu_custom_call.1} parent=5 // pred_check
        %p471 = pneg %p470
      $region58: #{tpu_custom_call.1} parent=5 // pred_check_branch
        %473 = sbr.rel (%p471) target = $region60
      $region59: #{tpu_custom_call.1} parent=5 // pred_region
        %s474 = ssub.s32 %s21, 2
        // Predicated region
        $region61: #{tpu_custom_call.1} parent=59 // pred_check
          %p475 = pneg %p132
        $region62: #{tpu_custom_call.1} parent=59 // pred_check_branch
          %477 = sbr.rel (%p475) target = $region64
        $region63: #{tpu_custom_call.1} parent=59 // pred_region
          %s478 = sand.u32 %s117, 1
          %s479 = scalar_lea.sflag [#allocation4], %s478
          %s480 = sand.u32 %s117, 1
          %s481 = smul.addr %s480, 2
          %s482 = scalar_lea.vmem [#allocation8], %s481
          %484 = dma.done %s479, 32
        $region64: #{tpu_custom_call.1} parent=59 // pred_fallthru
          _
        // Predicated region
        $region65: #{tpu_custom_call.1} parent=59 // pred_check
          %p485 = pneg %p158
        $region66: #{tpu_custom_call.1} parent=59 // pred_check_branch
          %487 = sbr.rel (%p485) target = $region68
        $region67: #{tpu_custom_call.1} parent=59 // pred_region
          %s488 = sand.u32 %s143, 1
          %s489 = scalar_lea.sflag [#allocation10], %s488
          %s490 = sand.u32 %s143, 1
          %s491 = smul.addr %s490, 2
          %s492 = scalar_lea.vmem [#allocation9], %s491
          %494 = dma.done %s489, 32
        $region68: #{tpu_custom_call.1} parent=59 // pred_fallthru
          _
      $region60: #{tpu_custom_call.1} parent=5 // pred_fallthru
        _
    $region6: #{tpu_custom_call.1} parent=1 // loop_footer
      %s25 = sadd.s32 1, %s21
    $region7: #{tpu_custom_call.1} parent=1 // loop_footer_branch
      %20 = sbr.rel target = $region3
    $region8: #{tpu_custom_call.1} parent=1 // loop_exit
      _
    %495 = vsyncpa [#allocation3], 1
    %s496 = scalar_lea.sflag [#allocation3], 1
    %497 = vsyncpa %s496, 1
    %498 = vsyncpa [#allocation6], 1
    %499 = vsyncpa [#allocation4], 1
    %s500 = scalar_lea.sflag [#allocation4], 1
    %501 = vsyncpa %s500, 1
    %502 = vsyncpa [#allocation10], 1
    %s503 = scalar_lea.sflag [#allocation10], 1
    %504 = vsyncpa %s503, 1

</llo_original>
